<compile_context>
chip_gen: v5e
topology: v5e:2x2
jax: 0.10.0
libtpu: 0.0.40
codegen_flags: <defaults>
</compile_context>

<pallas_src>
import functools

import jax
import jax.numpy as jnp
from jax.experimental import pallas as pl
from jax.experimental.pallas import tpu as pltpu


def _round_up(x, m):
    return ((x + m - 1) // m) * m


def _matmul_relu_kernel(xl_ref, xr_ref, o_ref, *, cast_bf16):
    # xl_ref: (TM, D) row slab; xr_ref: (TN or N, D); o_ref: (TM, TN or N).
    a = xl_ref[...]
    b = xr_ref[...]
    if cast_bf16:
        # Optional v5e compute-bound optimization (bf16 MXU, f32 accumulation).
        a = a.astype(jnp.bfloat16)
        b = b.astype(jnp.bfloat16)
    acc = jax.lax.dot_general(
        a, b,
        dimension_numbers=(((1,), (1,)), ((), ())),   # contract over D
        preferred_element_type=jnp.float32,
    )
    o_ref[...] = jnp.maximum(acc, 0.0).astype(o_ref.dtype)


def stru_decoder(x, tm=512, tn=512, out_dtype=None, matmul_in_bf16=False):
    """Pallas equivalent of stru_Decoder.forward: relu(x @ x.transpose(0, 2, 1))."""
    B, N, D = x.shape
    out_dtype = x.dtype if out_dtype is None else jnp.dtype(out_dtype)
    in_itemsize = jnp.dtype(x.dtype).itemsize
    out_itemsize = jnp.dtype(out_dtype).itemsize

    kernel = functools.partial(_matmul_relu_kernel, cast_bf16=bool(matmul_in_bf16))

    # Row-slab height: full N when it fits in one tile (always a legal block
    # since it equals the full dim), otherwise the (8-aligned) default tile.
    tm_eff = N if N <= tm else tm
    # Keep >= 2 grid blocks so v7x megacore can shard across its 2 TensorCores.
    if B * pl.cdiv(N, tm_eff) < 2 and tm_eff >= 16:
        half = _round_up(pl.cdiv(tm_eff, 2), 8)
        if 8 <= half < tm_eff:
            tm_eff = half

    cost = pl.CostEstimate(
        flops=2 * B * N * N * D,
        transcendentals=0,
        bytes_accessed=2 * B * N * D * in_itemsize + B * N * N * out_itemsize,
    )

    # Conservative double-buffered VMEM estimate for the batch-resident path
    # (LHS slab + resident RHS + full-width output slab).  20 MiB keeps clear
    # headroom under the 32 MiB scoped default on all generations incl. v7x.
    vmem_budget = 20 * 1024 * 1024
    resident_bytes = 2 * ((tm_eff * D + N * D) * in_itemsize
                          + tm_eff * N * out_itemsize)

    if resident_bytes <= vmem_budget:
        # Fast path: batch-resident RHS; one lane-dense (TM, N) output slab per step.
        return pl.pallas_call(
            kernel,
            out_shape=jax.ShapeDtypeStruct((B, N, N), out_dtype),
            grid_spec=pltpu.PrefetchScalarGridSpec(
                num_scalar_prefetch=0,
                grid=(B, pl.cdiv(N, tm_eff)),
                in_specs=[
                    pl.BlockSpec((pl.Squeezed(), tm_eff, D), lambda b, i: (b, i, 0)),
                    # Constant block index over i -> DMA'd once per batch.
                    pl.BlockSpec((pl.Squeezed(), N, D), lambda b, i: (b, 0, 0)),
                ],
                out_specs=pl.BlockSpec((pl.Squeezed(), tm_eff, N),
                                       lambda b, i: (b, i, 0)),
            ),
            compiler_params=pltpu.CompilerParams(
                dimension_semantics=("parallel", "parallel")),
            cost_estimate=cost,
        )(x, x)

    # Fallback for very large N: 3-D cdiv-tiled grid, VMEM bounded by the tiles.
    tn_eff = N if N <= tn else tn    # tn default 512 (multiple of 128)
    return pl.pallas_call(
        kernel,
        out_shape=jax.ShapeDtypeStruct((B, N, N), out_dtype),
        grid_spec=pltpu.PrefetchScalarGridSpec(
            num_scalar_prefetch=0,
            grid=(B, pl.cdiv(N, tm_eff), pl.cdiv(N, tn_eff)),
            in_specs=[
                pl.BlockSpec((pl.Squeezed(), tm_eff, D), lambda b, i, j: (b, i, 0)),
                pl.BlockSpec((pl.Squeezed(), tn_eff, D), lambda b, i, j: (b, j, 0)),
            ],
            out_specs=pl.BlockSpec((pl.Squeezed(), tm_eff, tn_eff),
                                   lambda b, i, j: (b, i, j)),
        ),
        compiler_params=pltpu.CompilerParams(
            dimension_semantics=("parallel", "parallel", "parallel")),
        cost_estimate=cost,
    )(x, x)


if __name__ == "__main__":
    key = jax.random.PRNGKey(0)

    # Small shape implied by the module: batch=2, seq=8, embedding_dim=32.
    B, N, D = 2, 8, 32
    x = jax.random.normal(key, (B, N, D), dtype=jnp.float32)
    out = jax.block_until_ready(stru_decoder(x))
    ref = jnp.maximum(jnp.einsum("bnd,bmd->bnm", x, x), 0.0)
    assert out.shape == (B, N, N) and out.dtype == x.dtype
    assert jnp.allclose(out, ref, atol=1e-5, rtol=1e-5)

    # Lane-dense path with megacore split (B=1 -> row tile halved to 2 blocks).
    B2, N2, D2 = 1, 256, 64
    x2 = jax.random.normal(jax.random.PRNGKey(0), (B2, N2, D2), dtype=jnp.float32)
    out2 = jax.block_until_ready(stru_decoder(x2))
    ref2 = jnp.maximum(jnp.einsum("bnd,bmd->bnm", x2, x2), 0.0)
    assert out2.shape == (B2, N2, N2) and out2.dtype == x2.dtype
    assert jnp.allclose(out2, ref2, atol=1e-4, rtol=1e-4)

    # Ragged N (not a multiple of the tile): exercises the cdiv grid + masked
    # edge writes that replaced the old whole-(N,N) batched fallback.
    B3, N3, D3 = 1, 200, 32
    x3 = jax.random.normal(jax.random.PRNGKey(0), (B3, N3, D3), dtype=jnp.float32)
    out3 = jax.block_until_ready(stru_decoder(x3))
    ref3 = jnp.maximum(jnp.einsum("bnd,bmd->bnm", x3, x3), 0.0)
    assert out3.shape == (B3, N3, N3) and out3.dtype == x3.dtype
    assert jnp.allclose(out3, ref3, atol=1e-4, rtol=1e-4)

    print("KERNEL_OK")
</pallas_src>

<mosaic_0001>
module attributes {stable_mosaic.version = 11 : i64} {
  func.func @_matmul_relu_kernel(%arg0: i32, %arg1: i32, %arg2: memref<1x8x32xf32, #tpu.memory_space<vmem>>, %arg3: memref<1x8x32xf32, #tpu.memory_space<vmem>>, %arg4: memref<1x8x8xf32, #tpu.memory_space<vmem>>) attributes {dimension_semantics = [#tpu.dimension_semantics<parallel>, #tpu.dimension_semantics<parallel>], iteration_bounds = array<i64: 2, 1>, scalar_prefetch = 0 : i64, scratch_operands = 0 : i64, tpu.core_type = #tpu.core_type<tc>, window_params = [{transform_indices = @transform_0, window_bounds = array<i64: 1, 8, 32>}, {transform_indices = @transform_1, window_bounds = array<i64: 1, 8, 32>}, {transform_indices = @transform_2, window_bounds = array<i64: 1, 8, 8>}]} {
    %c0 = arith.constant 0 : index
    %c0_0 = arith.constant 0 : index
    %c0_1 = arith.constant 0 : index
    %0 = vector.load %arg2[%c0, %c0_0, %c0_1] : memref<1x8x32xf32, #tpu.memory_space<vmem>>, vector<1x8x32xf32>
    %1 = vector.shape_cast %0 : vector<1x8x32xf32> to vector<8x32xf32>
    %c0_2 = arith.constant 0 : index
    %c0_3 = arith.constant 0 : index
    %c0_4 = arith.constant 0 : index
    %2 = vector.load %arg3[%c0_2, %c0_3, %c0_4] : memref<1x8x32xf32, #tpu.memory_space<vmem>>, vector<1x8x32xf32>
    %3 = vector.shape_cast %2 : vector<1x8x32xf32> to vector<8x32xf32>
    %cst = arith.constant dense<0.000000e+00> : vector<8x8xf32>
    %4 = tpu.matmul %1, %3, %cst {dimension_numbers = #tpu.dot_dimension_numbers<[1], [1], [0], [0], [0, 0, 1, 0], [], []>} : vector<8x32xf32>, vector<8x32xf32>, vector<8x8xf32> -> vector<8x8xf32>
    %cst_5 = arith.constant 0.000000e+00 : f32
    %5 = vector.broadcast %cst_5 : f32 to vector<8x8xf32>
    %6 = arith.maximumf %4, %5 : vector<8x8xf32>
    %c0_6 = arith.constant 0 : index
    %c0_7 = arith.constant 0 : index
    %c0_8 = arith.constant 0 : index
    %7 = vector.load %arg4[%c0_6, %c0_7, %c0_8] : memref<1x8x8xf32, #tpu.memory_space<vmem>>, vector<1x8x8xf32>
    %8 = vector.shape_cast %7 : vector<1x8x8xf32> to vector<8x8xf32>
    %9 = vector.shape_cast %6 : vector<8x8xf32> to vector<1x8x8xf32>
    tpu.vector_store %arg4[%c0_6, %c0_7, %c0_8], %9 {strides = array<i32>} : memref<1x8x8xf32, #tpu.memory_space<vmem>>, vector<1x8x8xf32>,
    return
  }
  func.func @transform_0(%arg0: i32, %arg1: i32) -> (i32, i32, i32) {
    %c0_i32 = arith.constant 0 : i32
    %c0_i32_0 = arith.constant 0 : i32
    return %arg0, %arg1, %c0_i32 : i32, i32, i32
  }
  func.func @transform_1(%arg0: i32, %arg1: i32) -> (i32, i32, i32) {
    %c0_i32 = arith.constant 0 : i32
    %c0_i32_0 = arith.constant 0 : i32
    %c0_i32_1 = arith.constant 0 : i32
    return %arg0, %c0_i32, %c0_i32_0 : i32, i32, i32
  }
  func.func @transform_2(%arg0: i32, %arg1: i32) -> (i32, i32, i32) {
    %c0_i32 = arith.constant 0 : i32
    %c0_i32_0 = arith.constant 0 : i32
    return %arg0, %arg1, %c0_i32 : i32, i32, i32
  }
}

</mosaic_0001>

<llo_original>
// kernel: tpu_custom_call.1
$region0: #{tpu_custom_call.1}
  #allocation0 [shape = 'u32[]', space=smem, size = 0x4, offset = 0x4, fixed_abs, tag = 'smem constant byte address 0x4 - core index']
  #allocation1 [shape = 'u32[72,128]{1,0:T(1,128)}', space=vmem, size = 0x9000, scoped, tag = 'internal scratch']
  %s0 = inlined_call_operand.hbm [shape: f32[2,8,32], index: 0, kind: input, shape index: {}]
  %s1 = inlined_call_operand.hbm [shape: f32[2,8,32], index: 1, kind: input, shape index: {}]
  %s2 = inlined_call_operand.hbm [shape: f32[2,8,8], index: 2, kind: output, shape index: {}]
  %s3 = sld [smem:[#allocation0]]
  $region49: #{tpu_custom_call.1} parent=0
    _
  %s5 = ssub.s32 1, %s3
  %s6 = scalar_select 0, %s5, %s3
  $region1: #{tpu_custom_call.1} parent=0
    #allocation2 [shape = 'u8[8192]{0}', space=vmem, size = 0x2000, scoped, tag = 'input window, operand 0']
    #allocation3 [shape = 's32[2]{0}', space=sflag, size = 0x8, scoped, tag = 'scoped memory for tpu_custom_call.1']
    #allocation4 [shape = 's32[2]{0}', space=sflag, size = 0x8, scoped, tag = 'scoped memory for tpu_custom_call.1']
    #allocation5 [shape = 'u8[8192]{0}', space=vmem, size = 0x2000, scoped, tag = 'input window, operand 1']
    #allocation6 [shape = 's32[2]{0}', space=sflag, size = 0x8, scoped, tag = 'scoped memory for tpu_custom_call.1']
    #allocation7 [shape = 'u8[8192]{0}', space=vmem, size = 0x2000, scoped, tag = 'output window, operand 0']
    %7 = vsyncpa [#allocation3], 0
    %s8 = scalar_lea.sflag [#allocation3], 1
    %9 = vsyncpa %s8, 0
    %10 = vsyncpa [#allocation6], 0
    %s11 = scalar_lea.sflag [#allocation6], 1
    %12 = vsyncpa %s11, 0
    %13 = vsyncpa [#allocation4], 0
    %s14 = scalar_lea.sflag [#allocation4], 1
    %15 = vsyncpa %s14, 0
    loop: start=0, step=1, limit=4
    $region2: #{tpu_custom_call.1} parent=1 // loop_pre_header
      _
    $region3: #{tpu_custom_call.1} parent=1 // loop_header
      %s17 = sphi 0, %s21
      %p18 = scmp.ge.s32.totalorder %s17, 4
      %s24 = sphi 0, %s36
      %s25 = sphi 0, %s32
      %s26 = sphi 0, %s24
      %s27 = sphi 0, %s25
      %s28 = sphi 0, %s26
      %s29 = sphi 0, %s27
      %s41 = sphi 0, %s43
      %s44 = sphi 0, %s41
      %s45 = sphi 0, %s44
      %s61 = sphi 0, %s45
      %s67 = sphi 0, %s69
      %s70 = sphi 0, %s67
      %s71 = sphi 0, %s70
      %s87 = sphi 0, %s71
      %s95 = sphi 0, %s97
      %s98 = sphi 0, %s95
      %s99 = sphi 0, %s98
      %s115 = sphi 0, %s99
    $region4: #{tpu_custom_call.1} parent=1 // loop_header_branch
      %20 = sbr.rel (%p18) target = $region8
    $region5: #{tpu_custom_call.1} parent=1 // loop_body
      %s22 = ssub.s32 %s17, 1
      %s23 = ssub.s32 %s17, 2
      %s30 = sadd.s32 1, %s25
      %p31 = scmp.ge.s32.totalorder %s30, 1
      %s32 = scalar_select %p31, 0, %s30
      %s33 = sadd.s32 1, %s24
      %s34 = scalar_select %p31, %s33, %s24
      %p35 = scmp.ge.s32.totalorder %s34, 2
      %s36 = scalar_select %p35, 0, %s34
      %s37 = ssub.s32 %s24, %s36
      %s38 = ssub.s32 %s25, %s32
      %s39 = sor.u32 %s37, %s38
      %p40 = scmp.eq.s32.totalorder %s39, 0
      %s42 = sadd.s32 %s41, 1
      %s43 = scalar_select %p40, %s41, %s42
      %p46 = pneg %p40
      %p47 = scmp.eq.s32.totalorder %s17, 1
      %p48 = por %p46, %p47
      %p49 = scmp.ne.s32.totalorder %s41, %s44
      %p50 = scmp.eq.s32.totalorder %s17, 0
      %p51 = por %p49, %p50
      %p52 = scmp.ne.s32.totalorder %s41, %s44
      %p53 = scmp.eq.s32.totalorder %s22, 1
      %p54 = por %p52, %p53
      %p55 = scmp.ne.s32.totalorder %s44, %s45
      %p56 = scmp.eq.s32.totalorder %s22, 0
      %p57 = por %p55, %p56
      %p58 = scmp.ne.s32.totalorder %s44, %s45
      %p59 = scmp.eq.s32.totalorder %s23, 1
      %p60 = por %p58, %p59
      %p62 = scmp.ne.s32.totalorder %s45, %s61
      %p63 = scmp.eq.s32.totalorder %s23, 0
      %p64 = por %p62, %p63
      %s65 = ssub.s32 %s24, %s36
      %p66 = scmp.eq.s32.totalorder %s65, 0
      %s68 = sadd.s32 %s67, 1
      %s69 = scalar_select %p66, %s67, %s68
      %p72 = pneg %p66
      %p73 = scmp.eq.s32.totalorder %s17, 1
      %p74 = por %p72, %p73
      %p75 = scmp.ne.s32.totalorder %s67, %s70
      %p76 = scmp.eq.s32.totalorder %s17, 0
      %p77 = por %p75, %p76
      %p78 = scmp.ne.s32.totalorder %s67, %s70
      %p79 = scmp.eq.s32.totalorder %s22, 1
      %p80 = por %p78, %p79
      %p81 = scmp.ne.s32.totalorder %s70, %s71
      %p82 = scmp.eq.s32.totalorder %s22, 0
      %p83 = por %p81, %p82
      %p84 = scmp.ne.s32.totalorder %s70, %s71
      %p85 = scmp.eq.s32.totalorder %s23, 1
      %p86 = por %p84, %p85
      %p88 = scmp.ne.s32.totalorder %s71, %s87
      %p89 = scmp.eq.s32.totalorder %s23, 0
      %p90 = por %p88, %p89
      %s91 = ssub.s32 %s24, %s36
      %s92 = ssub.s32 %s25, %s32
      %s93 = sor.u32 %s91, %s92
      %p94 = scmp.eq.s32.totalorder %s93, 0
      %s96 = sadd.s32 %s95, 1
      %s97 = scalar_select %p94, %s95, %s96
      %p100 = pneg %p94
      %p101 = scmp.eq.s32.totalorder %s17, 1
      %p102 = por %p100, %p101
      %p103 = scmp.ne.s32.totalorder %s95, %s98
      %p104 = scmp.eq.s32.totalorder %s17, 0
      %p105 = por %p103, %p104
      %p106 = scmp.ne.s32.totalorder %s95, %s98
      %p107 = scmp.eq.s32.totalorder %s22, 1
      %p108 = por %p106, %p107
      %p109 = scmp.ne.s32.totalorder %s98, %s99
      %p110 = scmp.eq.s32.totalorder %s22, 0
      %p111 = por %p109, %p110
      %p112 = scmp.ne.s32.totalorder %s98, %s99
      %p113 = scmp.eq.s32.totalorder %s23, 1
      %p114 = por %p112, %p113
      %p116 = scmp.ne.s32.totalorder %s99, %s115
      %p117 = scmp.eq.s32.totalorder %s23, 0
      %p118 = por %p116, %p117
      %p119 = scmp.le.s32.totalorder 1, %s17
      %p120 = scmp.lt.s32.totalorder %s17, 3
      %p121 = pnand %p119, %p120
      %p122 = pneg %p121
      // Predicated region
      $region9: #{tpu_custom_call.1} parent=5 // pred_check
        _
      $region10: #{tpu_custom_call.1} parent=5 // pred_check_branch
        %124 = sbr.rel (%p121) target = $region12
      $region11: #{tpu_custom_call.1} parent=5 // pred_region
        %s125 = ssub.s32 %s17, 1
      $region12: #{tpu_custom_call.1} parent=5 // pred_fallthru
        _
      %p126 = scmp.lt.s32.totalorder %s17, 2
      // Predicated region
      $region13: #{tpu_custom_call.1} parent=5 // pred_check
        %p127 = pneg %p126
      $region14: #{tpu_custom_call.1} parent=5 // pred_check_branch
        %129 = sbr.rel (%p127) target = $region16
      $region15: #{tpu_custom_call.1} parent=5 // pred_region
        // Predicated region
        $region17: #{tpu_custom_call.1} parent=15 // pred_check
          %p130 = pneg %p51
        $region18: #{tpu_custom_call.1} parent=15 // pred_check_branch
          %132 = sbr.rel (%p130) target = $region20
        $region19: #{tpu_custom_call.1} parent=15 // pred_region
          %s133 = sand.u32 %s41, 1
          %s134 = scalar_lea.sflag [#allocation3], %s133
          %s135 = sand.u32 %s41, 1
          %s136 = smul.addr %s135, 8
          %s137 = scalar_lea.vmem [#allocation2], %s136
          %139 = vsyncadd %s134, 0
          %s140 = sadd.s32 %s25, %s24
          %s141 = smul.addr %s140, 8
          %s142 = scalar_lea.hbm %s0, %s141
          %s144 = sshll.u32 %s142, 4
          %s145 = int_to_ptr.hbm [resolvable:$true] %s144
          %s146 = sshll.u32 %s137, 4
          %s147 = int_to_ptr.vmem [resolvable:$true] %s146
          %149 = dma.hbm_to_vmem [thread:$0]  %s145, 128, %s147, %s134
        $region20: #{tpu_custom_call.1} parent=15 // pred_fallthru
          _
        // Predicated region
        $region21: #{tpu_custom_call.1} parent=15 // pred_check
          %p150 = pneg %p77
        $region22: #{tpu_custom_call.1} parent=15 // pred_check_branch
          %152 = sbr.rel (%p150) target = $region24
        $region23: #{tpu_custom_call.1} parent=15 // pred_region
          %s153 = sand.u32 %s67, 1
          %s154 = scalar_lea.sflag [#allocation6], %s153
          %s155 = sand.u32 %s67, 1
          %s156 = smul.addr %s155, 8
          %s157 = scalar_lea.vmem [#allocation5], %s156
          %159 = vsyncadd %s154, 0
          %s160 = smul.addr %s24, 8
          %s161 = scalar_lea.hbm %s1, %s160
          %s163 = sshll.u32 %s161, 4
          %s164 = int_to_ptr.hbm [resolvable:$true] %s163
          %s165 = sshll.u32 %s157, 4
          %s166 = int_to_ptr.vmem [resolvable:$true] %s165
          %168 = dma.hbm_to_vmem [thread:$0]  %s164, 128, %s166, %s154
        $region24: #{tpu_custom_call.1} parent=15 // pred_fallthru
          _
      $region16: #{tpu_custom_call.1} parent=5 // pred_fallthru
        _
      %p169 = scmp.le.s32.totalorder 1, %s17
      %p170 = scmp.lt.s32.totalorder %s17, 3
      %p171 = pnand %p169, %p170
      %p172 = pneg %p171
      // Predicated region
      $region25: #{tpu_custom_call.1} parent=5 // pred_check
        _
      $region26: #{tpu_custom_call.1} parent=5 // pred_check_branch
        %174 = sbr.rel (%p171) target = $region28
      $region27: #{tpu_custom_call.1} parent=5 // pred_region
        %s175 = ssub.s32 %s17, 1
        %s176 = sand.u32 %s44, 1
        %s177 = scalar_lea.sflag [#allocation3], %s176
        %s178 = sand.u32 %s44, 1
        %s179 = smul.addr %s178, 8
        %s180 = scalar_lea.vmem [#allocation2], %s179
        // Predicated region
        $region29: #{tpu_custom_call.1} parent=27 // pred_check
          %p181 = pneg %p57
        $region30: #{tpu_custom_call.1} parent=27 // pred_check_branch
          %183 = sbr.rel (%p181) target = $region32
        $region31: #{tpu_custom_call.1} parent=27 // pred_region
          %185 = dma.done %s177, 128
        $region32: #{tpu_custom_call.1} parent=27 // pred_fallthru
          _
        %s186 = sand.u32 %s70, 1
        %s187 = scalar_lea.sflag [#allocation6], %s186
        %s188 = sand.u32 %s70, 1
        %s189 = smul.addr %s188, 8
        %s190 = scalar_lea.vmem [#allocation5], %s189
        // Predicated region
        $region33: #{tpu_custom_call.1} parent=27 // pred_check
          %p191 = pneg %p83
        $region34: #{tpu_custom_call.1} parent=27 // pred_check_branch
          %193 = sbr.rel (%p191) target = $region36
        $region35: #{tpu_custom_call.1} parent=27 // pred_region
          %195 = dma.done %s187, 128
        $region36: #{tpu_custom_call.1} parent=27 // pred_fallthru
          _
        %s196 = sand.u32 %s44, 1
        %s197 = scalar_lea.sflag [#allocation3], %s196
        %s198 = sand.u32 %s44, 1
        %s199 = smul.addr %s198, 8
        %s200 = scalar_lea.vmem [#allocation2], %s199
        %p201 = pneg %p57
        %p202 = pneg %p54
        %s203 = sand.u32 %s70, 1
        %s204 = scalar_lea.sflag [#allocation6], %s203
        %s205 = sand.u32 %s70, 1
        %s206 = smul.addr %s205, 8
        %s207 = scalar_lea.vmem [#allocation5], %s206
        %p208 = pneg %p83
        %p209 = pneg %p80
        %p210 = pneg %p111
        %p211 = pneg %p108
        %s212 = sand.u32 %s98, 1
        %s213 = scalar_lea.sflag [#allocation4], %s212
        %s214 = sand.u32 %s98, 1
        %s215 = smul.addr %s214, 8
        %s216 = scalar_lea.vmem [#allocation7], %s215
        %v217 = vld [vmem:[%s180] sm:$0xff]
        %v218 = vld [vmem:[%s190] sm:$0xff]
        %vm219 = vcmask 261120
        %v221 = vsel %vm219, %v217, 0
        %v224 = vsel %vm219, %v218, 0
        %226 = vmatpush.xpose.msra.mxu0 0.0
        %227 = vmatpush.xpose.msra.mxu0 0.0
        %228 = vmatpush.xpose.msra.mxu0 0.0
        %229 = vmatpush.xpose.msra.mxu0 0.0
        %230 = vmatpush.xpose.msra.mxu0 0.0
        %231 = vmatpush.xpose.msra.mxu0 0.0
        %232 = vmatpush.xpose.msra.mxu0 0.0
        %233 = vmatpush.xpose.msra.mxu0 0.0
        %234 = vmatpush.xpose.msra.mxu0 0.0
        %235 = vmatpush.xpose.msra.mxu0 0.0
        %236 = vmatpush.xpose.msra.mxu0 0.0
        %237 = vmatpush.xpose.msra.mxu0 0.0
        %238 = vmatpush.xpose.msra.mxu0 0.0
        %239 = vmatpush.xpose.msra.mxu0 0.0
        %240 = vmatpush.xpose.msra.mxu0 0.0
        %241 = vmatpush.xpose.msra.mxu0 %v224
        %242 = vmatmul.f32.gmra.mxu0 %v221
        %v243 = vpop.f32.mrf.mxu0
        %v244 = vadd.f32 0.0, %v243
        %245 = vdwg.mxu0
        %v246 = vmax.f32 %v244, 0.0
        %vm247 = vcmask 64512
        %248 = vst.msk [vmem:[%s216] sm:$0xff] %vm247, %v246
        %s249 = sand.u32 %s98, 1
        %s250 = scalar_lea.sflag [#allocation4], %s249
        %s251 = sand.u32 %s98, 1
        %s252 = smul.addr %s251, 8
        %s253 = scalar_lea.vmem [#allocation7], %s252
        // Predicated region
        $region37: #{tpu_custom_call.1} parent=27 // pred_check
          %p254 = pneg %p108
        $region38: #{tpu_custom_call.1} parent=27 // pred_check_branch
          %256 = sbr.rel (%p254) target = $region40
        $region39: #{tpu_custom_call.1} parent=27 // pred_region
          %258 = vsyncadd %s250, 0
          %s259 = sadd.s32 %s27, %s26
          %s260 = smul.addr %s259, 8
          %s261 = scalar_lea.hbm %s2, %s260
          %s263 = sshll.u32 %s253, 4
          %s264 = int_to_ptr.vmem [resolvable:$true] %s263
          %s265 = sshll.u32 %s261, 4
          %s266 = int_to_ptr.hbm [resolvable:$true] %s265
          %268 = dma.vmem_to_hbm [thread:$0]  %s264, 128, %s266, %s250
        $region40: #{tpu_custom_call.1} parent=27 // pred_fallthru
          _
      $region28: #{tpu_custom_call.1} parent=5 // pred_fallthru
        _
      %p269 = scmp.le.s32.totalorder 2, %s17
      // Predicated region
      $region41: #{tpu_custom_call.1} parent=5 // pred_check
        %p270 = pneg %p269
      $region42: #{tpu_custom_call.1} parent=5 // pred_check_branch
        %272 = sbr.rel (%p270) target = $region44
      $region43: #{tpu_custom_call.1} parent=5 // pred_region
        %s273 = ssub.s32 %s17, 2
        // Predicated region
        $region45: #{tpu_custom_call.1} parent=43 // pred_check
          %p274 = pneg %p114
        $region46: #{tpu_custom_call.1} parent=43 // pred_check_branch
          %276 = sbr.rel (%p274) target = $region48
        $region47: #{tpu_custom_call.1} parent=43 // pred_region
          %s277 = sand.u32 %s99, 1
          %s278 = scalar_lea.sflag [#allocation4], %s277
          %s279 = sand.u32 %s99, 1
          %s280 = smul.addr %s279, 8
          %s281 = scalar_lea.vmem [#allocation7], %s280
          %283 = dma.done %s278, 128
        $region48: #{tpu_custom_call.1} parent=43 // pred_fallthru
          _
      $region44: #{tpu_custom_call.1} parent=5 // pred_fallthru
        _
    $region6: #{tpu_custom_call.1} parent=1 // loop_footer
      %s21 = sadd.s32 1, %s17
    $region7: #{tpu_custom_call.1} parent=1 // loop_footer_branch
      %16 = sbr.rel target = $region3
    $region8: #{tpu_custom_call.1} parent=1 // loop_exit
      _
    %284 = vsyncpa [#allocation3], 1
    %s285 = scalar_lea.sflag [#allocation3], 1
    %286 = vsyncpa %s285, 1
    %287 = vsyncpa [#allocation6], 1
    %s288 = scalar_lea.sflag [#allocation6], 1
    %289 = vsyncpa %s288, 1
    %290 = vsyncpa [#allocation4], 1
    %s291 = scalar_lea.sflag [#allocation4], 1
    %292 = vsyncpa %s291, 1

</llo_original>
